<compile_context>
chip_gen: v5e
topology: v5e:2x2
jax: 0.10.0
libtpu: 0.0.40
codegen_flags: <defaults>
</compile_context>

<pallas_src>
import jax
import jax.numpy as jnp
from jax import lax
from jax.experimental import pallas as pl
from jax.experimental.pallas import tpu as pltpu


_LANE = 128                       # feature dims / node counts padded to this
_MX_TILE = 128                    # maxpool row & source tile (bounds unrolled code)
_VMEM_LIMIT = 48 * 1024 * 1024    # cap only; fits v7x's 64 MiB physical VMEM
                                  # TODO(synk): per-generation budget (~96 MiB on v5e/v6e)


def _round_up(x, m):
    return ((x + m - 1) // m) * m


def _pad2(a, rows, cols):
    r, c = a.shape
    return jnp.pad(a, ((0, rows - r), (0, cols - c)))


def _pick_tile(n_pad, want_multi):
    """Largest of (512, 384, 256, 128) dividing n_pad; optionally require >=2 tiles."""
    for t in (512, 384, 256, 128):
        if t <= n_pad and n_pad % t == 0 and n_pad // t >= (2 if want_multi else 1):
            return t
    return n_pad


# ----------------------------- kernels --------------------------------------


def _sum_agg_kernel(adj_ref, fsrc_ref, fdst_ref, ideg_ref, wa_ref, ws_ref,
                    out_ref, acc_ref):
    """gcn / mean: acc += A_tile @ feat_src (bf16 MXU, f32 acc);
    at the last K step: scale by inv_deg, project, ReLU, L2-normalize."""
    k = pl.program_id(1)

    @pl.when(k == 0)
    def _():
        acc_ref[...] = jnp.zeros_like(acc_ref)

    # Native bf16 x bf16 MXU matmul, f32 accumulation.
    acc_ref[...] += jnp.dot(adj_ref[...], fsrc_ref[...],
                            preferred_element_type=jnp.float32)

    @pl.when(k == pl.num_programs(1) - 1)
    def _():
        agg = acc_ref[...] * ideg_ref[...]            # inv_deg precomputed in wrapper
        h = (jnp.dot(agg, wa_ref[...], preferred_element_type=jnp.float32)
             + jnp.dot(fdst_ref[...].astype(jnp.float32), ws_ref[...],
                       preferred_element_type=jnp.float32))
        h = jnp.maximum(h, 0.0)
        ss = jnp.sum(h * h, axis=-1, keepdims=True)
        # Equivalent (to first order) to x / max(||x||, 1e-12); EUP rsqrt.
        out_ref[...] = h * lax.rsqrt(jnp.maximum(ss, 1e-24))


def _max_agg_kernel(adj_ref, fsrc_ref, fdst_ref, wp_ref, bp_ref, wa_ref, ws_ref,
                    out_ref, t_scr, acc_ref):
    """maxpool: fused pool transform + blocked masked running max.

    The mask is exactly {0,1} and t = ReLU(...) >= 0, so `mask * t` with a 0
    identity reproduces scatter_reduce(amax, include_self=False, base=0)."""
    k = pl.program_id(1)

    @pl.when(k == 0)
    def _():
        acc_ref[...] = jnp.zeros_like(acc_ref)

    # Fused pool transform (MXU is otherwise idle on this path): bf16 x bf16 -> f32.
    t_scr[...] = jnp.maximum(
        jnp.dot(fsrc_ref[...], wp_ref[...], preferred_element_type=jnp.float32)
        + bp_ref[...], 0.0)

    tk = adj_ref.shape[1]
    acc = acc_ref[...]
    C = 8                                  # sources per chunk (one sublane group)
    for c in range(tk // C):               # static, bounded by _MX_TILE / 8 = 16 chunks
        s0 = c * C
        mc = adj_ref[:, s0:s0 + C].astype(jnp.float32)   # {0,1} mask chunk [TM, C]
        tc = t_scr[s0:s0 + C, :]                          # [C, din_p] pooled rows
        for j in range(C):
            # [TM,1] mask column (lane-broadcast) x [1,din] pooled row (sublane-broadcast)
            acc = jnp.maximum(acc, mc[:, j:j + 1] * tc[j:j + 1, :])
    acc_ref[...] = acc

    @pl.when(k == pl.num_programs(1) - 1)
    def _():
        h = (jnp.dot(acc_ref[...], wa_ref[...], preferred_element_type=jnp.float32)
             + jnp.dot(fdst_ref[...].astype(jnp.float32), ws_ref[...],
                       preferred_element_type=jnp.float32))
        h = jnp.maximum(h, 0.0)
        ss = jnp.sum(h * h, axis=-1, keepdims=True)
        out_ref[...] = h * lax.rsqrt(jnp.maximum(ss, 1e-24))


# ----------------------------- wrapper ---------------------------------------


class GraphSageLayer:
    """JAX/Pallas port of the PyTorch GraphSageLayer forward pass."""

    def __init__(self, dim_in: int, dim_out: int, agg_type: str, key):
        self.dim_in = dim_in
        self.dim_out = dim_out
        self.agg_type = agg_type
        self.din_p = _round_up(dim_in, _LANE)
        self.dout_p = _round_up(dim_out, _LANE)

        k0, k1, k2, _ = jax.random.split(key, 4)
        scale = 0.1
        if agg_type == "gcn":
            self.weight = scale * jax.random.normal(k0, (dim_out, dim_in), jnp.float32)
            self.bias_w = scale * jax.random.normal(k1, (dim_out, dim_in), jnp.float32)
            self.w_agg = _pad2(self.weight.T, self.din_p, self.dout_p)
            self.w_self = _pad2(self.bias_w.T, self.din_p, self.dout_p)
        elif agg_type == "mean":
            self.weight = scale * jax.random.normal(k0, (dim_out, 2 * dim_in), jnp.float32)
            self.w_agg = _pad2(self.weight[:, :dim_in].T, self.din_p, self.dout_p)
            self.w_self = _pad2(self.weight[:, dim_in:].T, self.din_p, self.dout_p)
        elif agg_type == "maxpool":
            self.pool_w = scale * jax.random.normal(k0, (dim_in, dim_in), jnp.float32)
            self.pool_b = scale * jax.random.normal(k1, (dim_in,), jnp.float32)
            self.weight = scale * jax.random.normal(k2, (dim_out, 2 * dim_in), jnp.float32)
            self.wpool_t = _pad2(self.pool_w.T, self.din_p, self.din_p).astype(jnp.bfloat16)
            self.bpool = _pad2(self.pool_b.reshape(1, dim_in), 1, self.din_p)
            self.w_agg = _pad2(self.weight[:, :dim_in].T, self.din_p, self.dout_p)
            self.w_self = _pad2(self.weight[:, dim_in:].T, self.din_p, self.dout_p)
        else:
            raise RuntimeError(f"Unknown aggregation type: {agg_type}")

    @staticmethod
    def _cparams(semantics):
        return pltpu.CompilerParams(dimension_semantics=semantics,
                                    vmem_limit_bytes=_VMEM_LIMIT)

    def __call__(self, feat, edge, degree):
        n, din = feat.shape
        assert din == self.dim_in
        din_p, dout_p = self.din_p, self.dout_p

        n_pad = _round_up(n, _LANE)          # rows padded to 128 only (no tile over-pad)
        src, dst = edge[:, 0], edge[:, 1]
        # bf16 features: halves the re-read source stream; exact enough (f32 acc).
        feat_p = _pad2(feat.astype(jnp.float32), n_pad, din_p).astype(jnp.bfloat16)

        w_spec = pl.BlockSpec((din_p, dout_p), lambda i, k: (0, 0))
        dim_sem = ("parallel", "arbitrary")   # rows sharded over cores, K is a reduction

        if self.agg_type in ("gcn", "mean"):
            tm = _pick_tile(n_pad, want_multi=True)    # >=2 row tiles when possible
            tk = _pick_tile(n_pad, want_multi=False)   # biggest K block that divides
            # A[dst, src] = edge multiplicity (matches index_add); bf16 is exact <= 256.
            adj = (jnp.zeros((n_pad, n_pad), jnp.float32)
                   .at[dst, src].add(1.0).astype(jnp.bfloat16))
            inv_deg = 1.0 / jnp.maximum(degree.astype(jnp.float32), 1.0)
            ideg_p = _pad2(inv_deg.reshape(n, 1), n_pad, 1)

            grid = (n_pad // tm, n_pad // tk)
            row_tiles = grid[0]
            cost = pl.CostEstimate(
                flops=2 * n_pad * n_pad * din_p + 4 * n_pad * din_p * dout_p,
                transcendentals=n_pad,
                bytes_accessed=(n_pad * n_pad * 2                      # adj (bf16)
                                + row_tiles * n_pad * din_p * 2        # fsrc re-reads
                                + n_pad * din_p * 2                    # fdst
                                + n_pad * 4                            # inv_deg
                                + 2 * din_p * dout_p * 4               # weights
                                + n_pad * dout_p * 4))                 # out
            out = pl.pallas_call(
                _sum_agg_kernel,
                out_shape=jax.ShapeDtypeStruct((n_pad, dout_p), jnp.float32),
                grid=grid,
                in_specs=[pl.BlockSpec((tm, tk), lambda i, k: (i, k)),       # adj
                          pl.BlockSpec((tk, din_p), lambda i, k: (k, 0)),    # feat (src)
                          pl.BlockSpec((tm, din_p), lambda i, k: (i, 0)),    # feat (dst)
                          pl.BlockSpec((tm, 1), lambda i, k: (i, 0)),        # inv_deg
                          w_spec, w_spec],
                out_specs=pl.BlockSpec((tm, dout_p), lambda i, k: (i, 0)),
                scratch_shapes=[pltpu.VMEM((tm, din_p), jnp.float32)],
                compiler_params=self._cparams(dim_sem),
                cost_estimate=cost,
            )(adj, feat_p, feat_p, ideg_p, self.w_agg, self.w_self)

        else:  # maxpool
            tm = tk = _MX_TILE
            # 0/1 mask (only `edge exists` matters for max).
            mask = (jnp.zeros((n_pad, n_pad), jnp.float32)
                    .at[dst, src].max(1.0).astype(jnp.bfloat16))

            grid = (n_pad // tm, n_pad // tk)
            row_tiles = grid[0]
            cost = pl.CostEstimate(
                flops=(row_tiles * n_pad * 2 * din_p * din_p      # fused pool recompute
                       + 2 * n_pad * n_pad * din_p                # VPU mul+max work
                       + 4 * n_pad * din_p * dout_p),
                transcendentals=n_pad,
                bytes_accessed=(n_pad * n_pad * 2
                                + row_tiles * n_pad * din_p * 2
                                + n_pad * din_p * 2
                                + din_p * din_p * 2 + din_p * 4
                                + 2 * din_p * dout_p * 4
                                + n_pad * dout_p * 4))
            out = pl.pallas_call(
                _max_agg_kernel,
                out_shape=jax.ShapeDtypeStruct((n_pad, dout_p), jnp.float32),
                grid=grid,
                in_specs=[pl.BlockSpec((tm, tk), lambda i, k: (i, k)),       # mask
                          pl.BlockSpec((tk, din_p), lambda i, k: (k, 0)),    # feat (src)
                          pl.BlockSpec((tm, din_p), lambda i, k: (i, 0)),    # feat (dst)
                          pl.BlockSpec((din_p, din_p), lambda i, k: (0, 0)), # Wpool^T
                          pl.BlockSpec((1, din_p), lambda i, k: (0, 0)),     # bpool
                          w_spec, w_spec],
                out_specs=pl.BlockSpec((tm, dout_p), lambda i, k: (i, 0)),
                scratch_shapes=[pltpu.VMEM((tk, din_p), jnp.float32),   # pooled t
                                pltpu.VMEM((tm, din_p), jnp.float32)],  # running max
                compiler_params=self._cparams(dim_sem),
                cost_estimate=cost,
            )(mask, feat_p, feat_p, self.wpool_t, self.bpool,
              self.w_agg, self.w_self)

        return out[:n, :self.dim_out]


# ----------------------------- pure-JAX reference ----------------------------


def reference(layer: GraphSageLayer, feat, edge, degree):
    src, dst = edge[:, 0], edge[:, 1]
    inv_deg = (1.0 / jnp.maximum(degree.astype(jnp.float32), 1.0))[:, None]
    relu = lambda x: jnp.maximum(x, 0.0)
    if layer.agg_type == "gcn":
        agg = jnp.zeros_like(feat).at[dst].add(feat[src])
        out = relu((agg * inv_deg) @ layer.weight.T + feat @ layer.bias_w.T)
    elif layer.agg_type == "mean":
        agg = jnp.zeros_like(feat).at[dst].add(feat[src]) * inv_deg
        out = relu(jnp.concatenate([agg, feat], axis=-1) @ layer.weight.T)
    else:  # maxpool
        t = relu(feat @ layer.pool_w.T + layer.pool_b)
        agg = jnp.full_like(feat, -jnp.inf).at[dst].max(t[src])
        agg = jnp.where(jnp.isneginf(agg), 0.0, agg)
        out = relu(jnp.concatenate([agg, feat], axis=-1) @ layer.weight.T)
    nrm = jnp.sqrt(jnp.sum(out * out, axis=-1, keepdims=True))
    return out / jnp.maximum(nrm, 1e-12)


# ----------------------------- demo ------------------------------------------

if __name__ == "__main__":
    key = jax.random.PRNGKey(0)
    DIM_IN, DIM_OUT = 8, 16
    ok = True
    # N=16: single-tile sanity. N=300: pads to 384 -> 3 "parallel" row tiles.
    # N=520: pads to 640 -> 5x5 grid, exercises the K-reduction accumulator.
    for (N, E) in ((16, 48), (300, 1200), (520, 2000)):
        k_feat, k_edge, k_param = jax.random.split(jax.random.fold_in(key, N), 3)
        feat = jax.random.normal(k_feat, (N, DIM_IN), jnp.float32)
        edge = jax.random.randint(k_edge, (E, 2), 0, N, jnp.int32)      # (src, dst)
        degree = jnp.zeros((N,), jnp.float32).at[edge[:, 1]].add(1.0)   # in-degree

        for agg_type in ("gcn", "mean", "maxpool"):
            layer = GraphSageLayer(DIM_IN, DIM_OUT, agg_type, k_param)
            out = layer(feat, edge, degree)
            jax.block_until_ready(out)
            ref = reference(layer, feat, edge, degree)
            # bf16 feature / pool-weight storage -> relaxed vs. the f32 reference
            # (f32 accumulation keeps the error ~1e-3; outputs are unit-normalized).
            if out.shape != ref.shape or not jnp.allclose(out, ref,
                                                          atol=2e-2, rtol=2e-2):
                ok = False
                print(f"MISMATCH N={N} agg_type={agg_type}: "
                      f"max err = {float(jnp.max(jnp.abs(out - ref)))}")

    if ok:
        print("KERNEL_OK")
</pallas_src>

<mosaic_0001>
module attributes {stable_mosaic.version = 11 : i64} {
  func.func @_sum_agg_kernel(%arg0: i32, %arg1: i32, %arg2: memref<128x128xbf16, #tpu.memory_space<vmem>>, %arg3: memref<128x128xbf16, #tpu.memory_space<vmem>>, %arg4: memref<128x128xbf16, #tpu.memory_space<vmem>>, %arg5: memref<128x1xf32, #tpu.memory_space<vmem>>, %arg6: memref<128x128xf32, #tpu.memory_space<vmem>>, %arg7: memref<128x128xf32, #tpu.memory_space<vmem>>, %arg8: memref<128x128xf32, #tpu.memory_space<vmem>>, %arg9: memref<128x128xf32, #tpu.memory_space<vmem>>) attributes {dimension_semantics = [#tpu.dimension_semantics<parallel>, #tpu.dimension_semantics<arbitrary>], iteration_bounds = array<i64: 1, 1>, scalar_prefetch = 0 : i64, scratch_operands = 1 : i64, tpu.core_type = #tpu.core_type<tc>, window_params = [{transform_indices = @transform_0, window_bounds = array<i64: 128, 128>}, {transform_indices = @transform_1, window_bounds = array<i64: 128, 128>}, {transform_indices = @transform_2, window_bounds = array<i64: 128, 128>}, {transform_indices = @transform_3, window_bounds = array<i64: 128, 1>}, {pipeline_mode = #tpu.pipeline_mode<synchronous>, transform_indices = @transform_4, window_bounds = array<i64: 128, 128>}, {pipeline_mode = #tpu.pipeline_mode<synchronous>, transform_indices = @transform_5, window_bounds = array<i64: 128, 128>}, {transform_indices = @transform_6, window_bounds = array<i64: 128, 128>}]} {
    %c0_i32 = arith.constant 0 : i32
    %0 = arith.cmpi eq, %arg1, %c0_i32 : i32
    %1 = arith.extui %0 : i1 to i32
    %c0_i32_0 = arith.constant 0 : i32
    %2 = arith.cmpi ne, %1, %c0_i32_0 : i32
    scf.if %2 {
      %cst_10 = arith.constant 0.000000e+00 : f32
      %12 = vector.broadcast %cst_10 : f32 to vector<128x128xf32>
      %c0_11 = arith.constant 0 : index
      %c0_12 = arith.constant 0 : index
      %13 = vector.load %arg9[%c0_11, %c0_12] : memref<128x128xf32, #tpu.memory_space<vmem>>, vector<128x128xf32>
      tpu.vector_store %arg9[%c0_11, %c0_12], %12 {strides = array<i32>} : memref<128x128xf32, #tpu.memory_space<vmem>>, vector<128x128xf32>,
    } else {
    }
    %c0 = arith.constant 0 : index
    %c0_1 = arith.constant 0 : index
    %3 = vector.load %arg9[%c0, %c0_1] : memref<128x128xf32, #tpu.memory_space<vmem>>, vector<128x128xf32>
    %c0_2 = arith.constant 0 : index
    %c0_3 = arith.constant 0 : index
    %4 = vector.load %arg2[%c0_2, %c0_3] : memref<128x128xbf16, #tpu.memory_space<vmem>>, vector<128x128xbf16>
    %c0_4 = arith.constant 0 : index
    %c0_5 = arith.constant 0 : index
    %5 = vector.load %arg3[%c0_4, %c0_5] : memref<128x128xbf16, #tpu.memory_space<vmem>>, vector<128x128xbf16>
    %cst = arith.constant dense<0.000000e+00> : vector<128x128xf32>
    %6 = tpu.matmul %4, %5, %cst {dimension_numbers = #tpu.dot_dimension_numbers<[1], [0], [0], [1], [0, 0, 1, 1], [], []>} : vector<128x128xbf16>, vector<128x128xbf16>, vector<128x128xf32> -> vector<128x128xf32>
    %7 = arith.addf %3, %6 : vector<128x128xf32>
    %c0_6 = arith.constant 0 : index
    %c0_7 = arith.constant 0 : index
    %8 = vector.load %arg9[%c0_6, %c0_7] : memref<128x128xf32, #tpu.memory_space<vmem>>, vector<128x128xf32>
    tpu.vector_store %arg9[%c0_6, %c0_7], %7 {strides = array<i32>} : memref<128x128xf32, #tpu.memory_space<vmem>>, vector<128x128xf32>,
    %c0_i32_8 = arith.constant 0 : i32
    %9 = arith.cmpi eq, %arg1, %c0_i32_8 : i32
    %10 = arith.extui %9 : i1 to i32
    %c0_i32_9 = arith.constant 0 : i32
    %11 = arith.cmpi ne, %10, %c0_i32_9 : i32
    scf.if %11 {
      %c0_10 = arith.constant 0 : index
      %c0_11 = arith.constant 0 : index
      %12 = vector.load %arg9[%c0_10, %c0_11] : memref<128x128xf32, #tpu.memory_space<vmem>>, vector<128x128xf32>
      %c0_12 = arith.constant 0 : index
      %c0_13 = arith.constant 0 : index
      %13 = vector.load %arg5[%c0_12, %c0_13] : memref<128x1xf32, #tpu.memory_space<vmem>>, vector<128x1xf32>
      %14 = vector.broadcast %13 : vector<128x1xf32> to vector<128x128xf32>
      %15 = arith.mulf %12, %14 : vector<128x128xf32>
      %c0_14 = arith.constant 0 : index
      %c0_15 = arith.constant 0 : index
      %16 = vector.load %arg6[%c0_14, %c0_15] : memref<128x128xf32, #tpu.memory_space<vmem>>, vector<128x128xf32>
      %cst_16 = arith.constant dense<0.000000e+00> : vector<128x128xf32>
      %17 = tpu.matmul %15, %16, %cst_16 {dimension_numbers = #tpu.dot_dimension_numbers<[1], [0], [0], [1], [0, 0, 1, 1], [], []>} : vector<128x128xf32>, vector<128x128xf32>, vector<128x128xf32> -> vector<128x128xf32>
      %c0_17 = arith.constant 0 : index
      %c0_18 = arith.constant 0 : index
      %18 = vector.load %arg4[%c0_17, %c0_18] : memref<128x128xbf16, #tpu.memory_space<vmem>>, vector<128x128xbf16>
      %19 = arith.extf %18 : vector<128x128xbf16> to vector<128x128xf32>
      %c0_19 = arith.constant 0 : index
      %c0_20 = arith.constant 0 : index
      %20 = vector.load %arg7[%c0_19, %c0_20] : memref<128x128xf32, #tpu.memory_space<vmem>>, vector<128x128xf32>
      %cst_21 = arith.constant dense<0.000000e+00> : vector<128x128xf32>
      %21 = tpu.matmul %19, %20, %cst_21 {dimension_numbers = #tpu.dot_dimension_numbers<[1], [0], [0], [1], [0, 0, 1, 1], [], []>} : vector<128x128xf32>, vector<128x128xf32>, vector<128x128xf32> -> vector<128x128xf32>
      %22 = arith.addf %17, %21 : vector<128x128xf32>
      %cst_22 = arith.constant 0.000000e+00 : f32
      %23 = vector.broadcast %cst_22 : f32 to vector<128x128xf32>
      %24 = arith.maximumf %22, %23 : vector<128x128xf32>
      %25 = arith.mulf %24, %24 : vector<128x128xf32>
      %cst_23 = arith.constant dense<0.000000e+00> : vector<128xf32>
      %26 = vector.multi_reduction <add>, %25, %cst_23 [1] : vector<128x128xf32> to vector<128xf32>
      %27 = vector.shape_cast %26 : vector<128xf32> to vector<128x1xf32>
      %cst_24 = arith.constant 1.000000e-24 : f32
      %28 = vector.broadcast %cst_24 : f32 to vector<128x1xf32>
      %29 = arith.maximumf %27, %28 : vector<128x1xf32>
      %30 = math.rsqrt %29 : vector<128x1xf32>
      %31 = vector.broadcast %30 : vector<128x1xf32> to vector<128x128xf32>
      %32 = arith.mulf %24, %31 : vector<128x128xf32>
      %c0_25 = arith.constant 0 : index
      %c0_26 = arith.constant 0 : index
      %33 = vector.load %arg8[%c0_25, %c0_26] : memref<128x128xf32, #tpu.memory_space<vmem>>, vector<128x128xf32>
      tpu.vector_store %arg8[%c0_25, %c0_26], %32 {strides = array<i32>} : memref<128x128xf32, #tpu.memory_space<vmem>>, vector<128x128xf32>,
    } else {
    }
    return
  }
  func.func @transform_0(%arg0: i32, %arg1: i32) -> (i32, i32) {
    %c0_i32 = arith.constant 0 : i32
    return %arg0, %arg1 : i32, i32
  }
  func.func @transform_1(%arg0: i32, %arg1: i32) -> (i32, i32) {
    %c0_i32 = arith.constant 0 : i32
    %c0_i32_0 = arith.constant 0 : i32
    return %arg1, %c0_i32 : i32, i32
  }
  func.func @transform_2(%arg0: i32, %arg1: i32) -> (i32, i32) {
    %c0_i32 = arith.constant 0 : i32
    %c0_i32_0 = arith.constant 0 : i32
    return %arg0, %c0_i32 : i32, i32
  }
  func.func @transform_3(%arg0: i32, %arg1: i32) -> (i32, i32) {
    %c0_i32 = arith.constant 0 : i32
    %c0_i32_0 = arith.constant 0 : i32
    return %arg0, %c0_i32 : i32, i32
  }
  func.func @transform_4(%arg0: i32, %arg1: i32) -> (i32, i32) {
    %c0_i32 = arith.constant 0 : i32
    %c0_i32_0 = arith.constant 0 : i32
    %c0_i32_1 = arith.constant 0 : i32
    return %c0_i32, %c0_i32_0 : i32, i32
  }
  func.func @transform_5(%arg0: i32, %arg1: i32) -> (i32, i32) {
    %c0_i32 = arith.constant 0 : i32
    %c0_i32_0 = arith.constant 0 : i32
    %c0_i32_1 = arith.constant 0 : i32
    return %c0_i32, %c0_i32_0 : i32, i32
  }
  func.func @transform_6(%arg0: i32, %arg1: i32) -> (i32, i32) {
    %c0_i32 = arith.constant 0 : i32
    %c0_i32_0 = arith.constant 0 : i32
    return %arg0, %c0_i32 : i32, i32
  }
}

</mosaic_0001>

<llo_original>
// kernel: tpu_custom_call.1
$region0: #{tpu_custom_call.1}
  #allocation0 [shape = 'u32[]', space=smem, size = 0x4, offset = 0x4, fixed_abs, tag = 'smem constant byte address 0x4 - core index']
  #allocation1 [shape = 'u32[72,128]{1,0:T(1,128)}', space=vmem, size = 0x9000, scoped, tag = 'internal scratch']
  #allocation2 [shape = 'f32[128,128]{1,0:T(8,128)}', space=vmem, size = 0x10000, scoped, tag = 'scratch operand']
  %s0 = inlined_call_operand.hbm [shape: bf16[128,128], index: 0, kind: input, shape index: {}]
  %s1 = inlined_call_operand.hbm [shape: bf16[128,128], index: 1, kind: input, shape index: {}]
  %s2 = inlined_call_operand.hbm [shape: bf16[128,128], index: 2, kind: input, shape index: {}]
  %s3 = inlined_call_operand.vmem [shape: f32[128,1], index: 3, kind: input, shape index: {}]
  %s4 = inlined_call_operand.vmem [shape: f32[128,128], index: 4, kind: input, shape index: {}]
  %s5 = inlined_call_operand.hbm [shape: f32[128,128], index: 5, kind: input, shape index: {}]
  %s6 = inlined_call_operand.hbm [shape: f32[128,128], index: 6, kind: output, shape index: {}]
  %s7 = sld [smem:[#allocation0]]
  $region58: #{tpu_custom_call.1} parent=0
    _
  %s9 = ssub.s32 1, %s7
  %s10 = scalar_select 0, %s9, %s7
  $region1: #{tpu_custom_call.1} parent=0
    #allocation3 [shape = 'u8[32768]{0}', space=vmem, size = 0x8000, scoped, tag = 'input window, operand 0, single buffered']
    #allocation4 [shape = 's32[1]{0}', space=sflag, size = 0x4, scoped, tag = 'scoped memory for tpu_custom_call.1']
    #allocation5 [shape = 's32[1]{0}', space=sflag, size = 0x4, scoped, tag = 'scoped memory for tpu_custom_call.1']
    #allocation6 [shape = 'u8[32768]{0}', space=vmem, size = 0x8000, scoped, tag = 'input window, operand 1, single buffered']
    #allocation7 [shape = 's32[1]{0}', space=sflag, size = 0x4, scoped, tag = 'scoped memory for tpu_custom_call.1']
    #allocation8 [shape = 'u8[32768]{0}', space=vmem, size = 0x8000, scoped, tag = 'input window, operand 2, single buffered']
    #allocation9 [shape = 'u8[65536]{0}', space=vmem, size = 0x10000, scoped, tag = 'input window, operand 5, single buffered']
    #allocation10 [shape = 's32[1]{0}', space=sflag, size = 0x4, scoped, tag = 'scoped memory for tpu_custom_call.1']
    #allocation11 [shape = 'u8[65536]{0}', space=vmem, size = 0x10000, scoped, tag = 'output window, operand 0, single buffered']
    %11 = vsyncpa [#allocation4], 0
    %12 = vsyncpa [#allocation7], 0
    %13 = vsyncpa [#allocation10], 0
    %14 = vsyncpa [#allocation5], 0
    // Predicated region
    $region2: #{tpu_custom_call.1} parent=1 // pred_check
      _
    $region3: #{tpu_custom_call.1} parent=1 // pred_check_branch
      %16 = sbr.rel (0) target = $region5
    $region4: #{tpu_custom_call.1} parent=1 // pred_region
      %18 = vsyncadd [#allocation4], 0
      %s19 = sshll.u32 %s0, 4
      %s20 = int_to_ptr.hbm [resolvable:$true] %s19
      %s21 = sshll.u32 [#allocation3], 4
      %s22 = int_to_ptr.vmem [resolvable:$true] %s21
      %27 = dma.hbm_to_vmem [thread:$0]  %s20, 1024, %s22, [#allocation4], 64, 64, 4
    $region5: #{tpu_custom_call.1} parent=1 // pred_fallthru
      _
    // Predicated region
    $region6: #{tpu_custom_call.1} parent=1 // pred_check
      _
    $region7: #{tpu_custom_call.1} parent=1 // pred_check_branch
      %29 = sbr.rel (0) target = $region9
    $region8: #{tpu_custom_call.1} parent=1 // pred_region
      %31 = vsyncadd [#allocation7], 0
      %s32 = sshll.u32 %s1, 4
      %s33 = int_to_ptr.hbm [resolvable:$true] %s32
      %s34 = sshll.u32 [#allocation6], 4
      %s35 = int_to_ptr.vmem [resolvable:$true] %s34
      %40 = dma.hbm_to_vmem [thread:$0]  %s33, 1024, %s35, [#allocation7], 64, 64, 4
    $region9: #{tpu_custom_call.1} parent=1 // pred_fallthru
      _
    // Predicated region
    $region10: #{tpu_custom_call.1} parent=1 // pred_check
      _
    $region11: #{tpu_custom_call.1} parent=1 // pred_check_branch
      %42 = sbr.rel (0) target = $region13
    $region12: #{tpu_custom_call.1} parent=1 // pred_region
      %44 = vsyncadd [#allocation7], 0
      %s45 = sshll.u32 %s2, 4
      %s46 = int_to_ptr.hbm [resolvable:$true] %s45
      %s47 = sshll.u32 [#allocation8], 4
      %s48 = int_to_ptr.vmem [resolvable:$true] %s47
      %53 = dma.hbm_to_vmem [thread:$0]  %s46, 1024, %s48, [#allocation7], 64, 64, 4
    $region13: #{tpu_custom_call.1} parent=1 // pred_fallthru
      _
    // Predicated region
    $region14: #{tpu_custom_call.1} parent=1 // pred_check
      _
    $region15: #{tpu_custom_call.1} parent=1 // pred_check_branch
      %55 = sbr.rel (0) target = $region17
    $region16: #{tpu_custom_call.1} parent=1 // pred_region
      _
    $region17: #{tpu_custom_call.1} parent=1 // pred_fallthru
      _
    // Predicated region
    $region18: #{tpu_custom_call.1} parent=1 // pred_check
      _
    $region19: #{tpu_custom_call.1} parent=1 // pred_check_branch
      %57 = sbr.rel (0) target = $region21
    $region20: #{tpu_custom_call.1} parent=1 // pred_region
      _
    $region21: #{tpu_custom_call.1} parent=1 // pred_fallthru
      _
    // Predicated region
    $region22: #{tpu_custom_call.1} parent=1 // pred_check
      _
    $region23: #{tpu_custom_call.1} parent=1 // pred_check_branch
      %59 = sbr.rel (0) target = $region25
    $region24: #{tpu_custom_call.1} parent=1 // pred_region
      %61 = vsyncadd [#allocation10], 0
      %s62 = sshll.u32 %s5, 4
      %s63 = int_to_ptr.hbm [resolvable:$true] %s62
      %s64 = sshll.u32 [#allocation9], 4
      %s65 = int_to_ptr.vmem [resolvable:$true] %s64
      %70 = dma.hbm_to_vmem [thread:$0]  %s63, 2048, %s65, [#allocation10], 128, 128, 8
    $region25: #{tpu_custom_call.1} parent=1 // pred_fallthru
      _
    // Predicated region
    $region26: #{tpu_custom_call.1} parent=1 // pred_check
      _
    $region27: #{tpu_custom_call.1} parent=1 // pred_check_branch
      %72 = sbr.rel (0) target = $region29
    $region28: #{tpu_custom_call.1} parent=1 // pred_region
      %74 = dma.done [#allocation4], 1024
    $region29: #{tpu_custom_call.1} parent=1 // pred_fallthru
      _
    // Predicated region
    $region30: #{tpu_custom_call.1} parent=1 // pred_check
      _
    $region31: #{tpu_custom_call.1} parent=1 // pred_check_branch
      %76 = sbr.rel (0) target = $region33
    $region32: #{tpu_custom_call.1} parent=1 // pred_region
      %78 = dma.done [#allocation7], 1024
    $region33: #{tpu_custom_call.1} parent=1 // pred_fallthru
      _
    // Predicated region
    $region34: #{tpu_custom_call.1} parent=1 // pred_check
      _
    $region35: #{tpu_custom_call.1} parent=1 // pred_check_branch
      %80 = sbr.rel (0) target = $region37
    $region36: #{tpu_custom_call.1} parent=1 // pred_region
      %82 = dma.done [#allocation7], 1024
    $region37: #{tpu_custom_call.1} parent=1 // pred_fallthru
      _
    // Predicated region
    $region38: #{tpu_custom_call.1} parent=1 // pred_check
      _
    $region39: #{tpu_custom_call.1} parent=1 // pred_check_branch
      %84 = sbr.rel (0) target = $region41
    $region40: #{tpu_custom_call.1} parent=1 // pred_region
      %86 = dma.done [#allocation10], 2048
    $region41: #{tpu_custom_call.1} parent=1 // pred_fallthru
      _
    %p87 = scmp.eq.s32.totalorder 0, 0
    // Predicated region
    $region42: #{tpu_custom_call.1} parent=1 // pred_check
      %p88 = pneg %p87
    $region43: #{tpu_custom_call.1} parent=1 // pred_check_branch
      %90 = sbr.rel (%p88) target = $region45
    $region44: #{tpu_custom_call.1} parent=1 // pred_region
      %91 = vst [vmem:[#allocation2] sm:$0xff] 0.0
      %92 = vst [vmem:[#allocation2 + $0x8] sm:$0xff] 0.0
      %93 = vst [vmem:[#allocation2 + $0x10] sm:$0xff] 0.0
      %94 = vst [vmem:[#allocation2 + $0x18] sm:$0xff] 0.0
      %95 = vst [vmem:[#allocation2 + $0x20] sm:$0xff] 0.0
      %96 = vst [vmem:[#allocation2 + $0x28] sm:$0xff] 0.0
      %97 = vst [vmem:[#allocation2 + $0x30] sm:$0xff] 0.0
      %98 = vst [vmem:[#allocation2 + $0x38] sm:$0xff] 0.0
      %99 = vst [vmem:[#allocation2 + $0x40] sm:$0xff] 0.0
      %100 = vst [vmem:[#allocation2 + $0x48] sm:$0xff] 0.0
      %101 = vst [vmem:[#allocation2 + $0x50] sm:$0xff] 0.0
      %102 = vst [vmem:[#allocation2 + $0x58] sm:$0xff] 0.0
      %103 = vst [vmem:[#allocation2 + $0x60] sm:$0xff] 0.0
      %104 = vst [vmem:[#allocation2 + $0x68] sm:$0xff] 0.0
      %105 = vst [vmem:[#allocation2 + $0x70] sm:$0xff] 0.0
      %106 = vst [vmem:[#allocation2 + $0x78] sm:$0xff] 0.0
    $region45: #{tpu_custom_call.1} parent=1 // pred_fallthru
      _
    %v107 = vld [vmem:[#allocation2] sm:$0xff]
    %v108 = vld [vmem:[#allocation2 + $0x8] sm:$0xff]
    %v109 = vld [vmem:[#allocation2 + $0x10] sm:$0xff]
    %v110 = vld [vmem:[#allocation2 + $0x18] sm:$0xff]
    %v111 = vld [vmem:[#allocation2 + $0x20] sm:$0xff]
    %v112 = vld [vmem:[#allocation2 + $0x28] sm:$0xff]
    %v113 = vld [vmem:[#allocation2 + $0x30] sm:$0xff]
    %v114 = vld [vmem:[#allocation2 + $0x38] sm:$0xff]
    %v115 = vld [vmem:[#allocation2 + $0x40] sm:$0xff]
    %v116 = vld [vmem:[#allocation2 + $0x48] sm:$0xff]
    %v117 = vld [vmem:[#allocation2 + $0x50] sm:$0xff]
    %v118 = vld [vmem:[#allocation2 + $0x58] sm:$0xff]
    %v119 = vld [vmem:[#allocation2 + $0x60] sm:$0xff]
    %v120 = vld [vmem:[#allocation2 + $0x68] sm:$0xff]
    %v121 = vld [vmem:[#allocation2 + $0x70] sm:$0xff]
    %v122 = vld [vmem:[#allocation2 + $0x78] sm:$0xff]
    %v123 = vld [vmem:[#allocation3] sm:$0xf]
    %v124 = vld [vmem:[#allocation3 + $0x4] sm:$0xf]
    %v125 = vld [vmem:[#allocation3 + $0x8] sm:$0xf]
    %v126 = vld [vmem:[#allocation3 + $0xc] sm:$0xf]
    %v127 = vld [vmem:[#allocation3 + $0x10] sm:$0xf]
    %v128 = vld [vmem:[#allocation3 + $0x14] sm:$0xf]
    %v129 = vld [vmem:[#allocation3 + $0x18] sm:$0xf]
    %v130 = vld [vmem:[#allocation3 + $0x1c] sm:$0xf]
    %v131 = vld [vmem:[#allocation3 + $0x20] sm:$0xf]
    %v132 = vld [vmem:[#allocation3 + $0x24] sm:$0xf]
    %v133 = vld [vmem:[#allocation3 + $0x28] sm:$0xf]
    %v134 = vld [vmem:[#allocation3 + $0x2c] sm:$0xf]
    %v135 = vld [vmem:[#allocation3 + $0x30] sm:$0xf]
    %v136 = vld [vmem:[#allocation3 + $0x34] sm:$0xf]
    %v137 = vld [vmem:[#allocation3 + $0x38] sm:$0xf]
    %v138 = vld [vmem:[#allocation3 + $0x3c] sm:$0xf]
    %v139 = vld [vmem:[#allocation6] sm:$0xf]
    %v140 = vld [vmem:[#allocation6 + $0x4] sm:$0xf]
    %v141 = vld [vmem:[#allocation6 + $0x8] sm:$0xf]
    %v142 = vld [vmem:[#allocation6 + $0xc] sm:$0xf]
    %v143 = vld [vmem:[#allocation6 + $0x10] sm:$0xf]
    %v144 = vld [vmem:[#allocation6 + $0x14] sm:$0xf]
    %v145 = vld [vmem:[#allocation6 + $0x18] sm:$0xf]
    %v146 = vld [vmem:[#allocation6 + $0x1c] sm:$0xf]
    %v147 = vld [vmem:[#allocation6 + $0x20] sm:$0xf]
    %v148 = vld [vmem:[#allocation6 + $0x24] sm:$0xf]
    %v149 = vld [vmem:[#allocation6 + $0x28] sm:$0xf]
    %v150 = vld [vmem:[#allocation6 + $0x2c] sm:$0xf]
    %v151 = vld [vmem:[#allocation6 + $0x30] sm:$0xf]
    %v152 = vld [vmem:[#allocation6 + $0x34] sm:$0xf]
    %v153 = vld [vmem:[#allocation6 + $0x38] sm:$0xf]
    %v154 = vld [vmem:[#allocation6 + $0x3c] sm:$0xf]
    %v171 = vunpack.c.l.b16 %v123
    %v172 = vunpack.c.l.b16 %v124
    %v173 = vunpack.c.l.b16 %v125
    %v174 = vunpack.c.l.b16 %v126
    %v175 = vunpack.c.l.b16 %v127
    %v176 = vunpack.c.l.b16 %v128
    %v177 = vunpack.c.l.b16 %v129
    %v178 = vunpack.c.l.b16 %v130
    %v179 = vunpack.c.l.b16 %v131
    %v180 = vunpack.c.l.b16 %v132
    %v181 = vunpack.c.l.b16 %v133
    %v182 = vunpack.c.l.b16 %v134
    %v183 = vunpack.c.l.b16 %v135
    %v184 = vunpack.c.l.b16 %v136
    %v185 = vunpack.c.l.b16 %v137
    %v186 = vunpack.c.l.b16 %v138
    %v187 = vpack.c.b16 %v172, %v171
    %v188 = vpack.c.b16 %v174, %v173
    %v189 = vpack.c.b16 %v176, %v175
    %v190 = vpack.c.b16 %v178, %v177
    %v191 = vpack.c.b16 %v180, %v179
    %v192 = vpack.c.b16 %v182, %v181
    %v193 = vpack.c.b16 %v184, %v183
    %v194 = vpack.c.b16 %v186, %v185
    %v219 = vunpack.c.l.b16 %v139
    %v220 = vunpack.c.l.b16 %v140
    %v221 = vunpack.c.l.b16 %v141
    %v222 = vunpack.c.l.b16 %v142
    %v223 = vunpack.c.l.b16 %v143
    %v224 = vunpack.c.l.b16 %v144
    %v225 = vunpack.c.l.b16 %v145
    %v226 = vunpack.c.l.b16 %v146
    %v227 = vunpack.c.l.b16 %v147
    %v228 = vunpack.c.l.b16 %v148
    %v229 = vunpack.c.l.b16 %v149
    %v230 = vunpack.c.l.b16 %v150
    %v231 = vunpack.c.l.b16 %v151
    %v232 = vunpack.c.l.b16 %v152
    %v233 = vunpack.c.l.b16 %v153
    %v234 = vunpack.c.l.b16 %v154
    %v235 = vpack.c.b16 %v220, %v219
    %v236 = vpack.c.b16 %v222, %v221
    %v237 = vpack.c.b16 %v224, %v223
    %v238 = vpack.c.b16 %v226, %v225
    %v239 = vpack.c.b16 %v228, %v227
    %v240 = vpack.c.b16 %v230, %v229
    %v241 = vpack.c.b16 %v232, %v231
    %v242 = vpack.c.b16 %v234, %v233
    %251 = vmatpush.bf16.msra.mxu0 %v242
    %252 = vmatpush.bf16.msra.mxu0 %v241
    %253 = vmatpush.bf16.msra.mxu0 %v240
    %254 = vmatpush.bf16.msra.mxu0 %v239
    %255 = vmatpush.bf16.msra.mxu0 %v238
    %256 = vmatpush.bf16.msra.mxu0 %v237
    %257 = vmatpush.bf16.msra.mxu0 %v236
    %258 = vmatpush.bf16.msra.mxu0 %v235
    %259 = vmatmul.bf16.gmra.mxu0 %v187
    %v260 = vpop.f32.mrf.mxu0
    %v261 = vadd.f32 0.0, %v260
    %v262 = vpop.f32.mrf.mxu0
    %v263 = vadd.f32 0.0, %v262
    %264 = vmatmul.bf16.gmra.mxu0 %v188
    %v265 = vpop.f32.mrf.mxu0
    %v266 = vadd.f32 0.0, %v265
    %v267 = vpop.f32.mrf.mxu0
    %v268 = vadd.f32 0.0, %v267
    %269 = vmatmul.bf16.gmra.mxu0 %v189
    %v270 = vpop.f32.mrf.mxu0
    %v271 = vadd.f32 0.0, %v270
    %v272 = vpop.f32.mrf.mxu0
    %v273 = vadd.f32 0.0, %v272
    %274 = vmatmul.bf16.gmra.mxu0 %v190
    %v275 = vpop.f32.mrf.mxu0
    %v276 = vadd.f32 0.0, %v275
    %v277 = vpop.f32.mrf.mxu0
    %v278 = vadd.f32 0.0, %v277
    %279 = vmatmul.bf16.gmra.mxu0 %v191
    %v280 = vpop.f32.mrf.mxu0
    %v281 = vadd.f32 0.0, %v280
    %v282 = vpop.f32.mrf.mxu0
    %v283 = vadd.f32 0.0, %v282
    %284 = vmatmul.bf16.gmra.mxu0 %v192
    %v285 = vpop.f32.mrf.mxu0
    %v286 = vadd.f32 0.0, %v285
    %v287 = vpop.f32.mrf.mxu0
    %v288 = vadd.f32 0.0, %v287
    %289 = vmatmul.bf16.gmra.mxu0 %v193
    %v290 = vpop.f32.mrf.mxu0
    %v291 = vadd.f32 0.0, %v290
    %v292 = vpop.f32.mrf.mxu0
    %v293 = vadd.f32 0.0, %v292
    %294 = vmatmul.bf16.gmra.mxu0 %v194
    %v295 = vpop.f32.mrf.mxu0
    %v296 = vadd.f32 0.0, %v295
    %v297 = vpop.f32.mrf.mxu0
    %v298 = vadd.f32 0.0, %v297
    %299 = vdwg.mxu0
    %v300 = vadd.f32 %v107, %v261
    %v301 = vadd.f32 %v108, %v263
    %v302 = vadd.f32 %v109, %v266
    %v303 = vadd.f32 %v110, %v268
    %v304 = vadd.f32 %v111, %v271
    %v305 = vadd.f32 %v112, %v273
    %v306 = vadd.f32 %v113, %v276
    %v307 = vadd.f32 %v114, %v278
    %v308 = vadd.f32 %v115, %v281
    %v309 = vadd.f32 %v116, %v283
    %v310 = vadd.f32 %v117, %v286
    %v311 = vadd.f32 %v118, %v288
    %v312 = vadd.f32 %v119, %v291
    %v313 = vadd.f32 %v120, %v293
    %v314 = vadd.f32 %v121, %v296
    %v315 = vadd.f32 %v122, %v298
    %316 = vst [vmem:[#allocation2] sm:$0xff] %v300
    %317 = vst [vmem:[#allocation2 + $0x8] sm:$0xff] %v301
    %318 = vst [vmem:[#allocation2 + $0x10] sm:$0xff] %v302
    %319 = vst [vmem:[#allocation2 + $0x18] sm:$0xff] %v303
    %320 = vst [vmem:[#allocation2 + $0x20] sm:$0xff] %v304
    %321 = vst [vmem:[#allocation2 + $0x28] sm:$0xff] %v305
    %322 = vst [vmem:[#allocation2 + $0x30] sm:$0xff] %v306
    %323 = vst [vmem:[#allocation2 + $0x38] sm:$0xff] %v307
    %324 = vst [vmem:[#allocation2 + $0x40] sm:$0xff] %v308
    %325 = vst [vmem:[#allocation2 + $0x48] sm:$0xff] %v309
    %326 = vst [vmem:[#allocation2 + $0x50] sm:$0xff] %v310
    %327 = vst [vmem:[#allocation2 + $0x58] sm:$0xff] %v311
    %328 = vst [vmem:[#allocation2 + $0x60] sm:$0xff] %v312
    %329 = vst [vmem:[#allocation2 + $0x68] sm:$0xff] %v313
    %330 = vst [vmem:[#allocation2 + $0x70] sm:$0xff] %v314
    %331 = vst [vmem:[#allocation2 + $0x78] sm:$0xff] %v315
    // Predicated region
    $region46: #{tpu_custom_call.1} parent=1 // pred_check
      %p332 = pneg %p87
    $region47: #{tpu_custom_call.1} parent=1 // pred_check_branch
      %334 = sbr.rel (%p332) target = $region49
    $region48: #{tpu_custom_call.1} parent=1 // pred_region
      %v335 = vld [vmem:[#allocation2] sm:$0xff]
      %v336 = vld [vmem:[#allocation2 + $0x8] sm:$0xff]
      %v337 = vld [vmem:[#allocation2 + $0x10] sm:$0xff]
      %v338 = vld [vmem:[#allocation2 + $0x18] sm:$0xff]
      %v339 = vld [vmem:[#allocation2 + $0x20] sm:$0xff]
      %v340 = vld [vmem:[#allocation2 + $0x28] sm:$0xff]
      %v341 = vld [vmem:[#allocation2 + $0x30] sm:$0xff]
      %v342 = vld [vmem:[#allocation2 + $0x38] sm:$0xff]
      %v343 = vld [vmem:[#allocation2 + $0x40] sm:$0xff]
      %v344 = vld [vmem:[#allocation2 + $0x48] sm:$0xff]
      %v345 = vld [vmem:[#allocation2 + $0x50] sm:$0xff]
      %v346 = vld [vmem:[#allocation2 + $0x58] sm:$0xff]
      %v347 = vld [vmem:[#allocation2 + $0x60] sm:$0xff]
      %v348 = vld [vmem:[#allocation2 + $0x68] sm:$0xff]
      %v349 = vld [vmem:[#allocation2 + $0x70] sm:$0xff]
      %v350 = vld [vmem:[#allocation2 + $0x78] sm:$0xff]
      %v351 = vld [vmem:[%s3] sm:$0xff]
      %v352 = vld [vmem:[%s3 + $0x8] sm:$0xff]
      %v353 = vld [vmem:[%s3 + $0x10] sm:$0xff]
      %v354 = vld [vmem:[%s3 + $0x18] sm:$0xff]
      %v355 = vld [vmem:[%s3 + $0x20] sm:$0xff]
      %v356 = vld [vmem:[%s3 + $0x28] sm:$0xff]
      %v357 = vld [vmem:[%s3 + $0x30] sm:$0xff]
      %v358 = vld [vmem:[%s3 + $0x38] sm:$0xff]
      %v359 = vld [vmem:[%s3 + $0x40] sm:$0xff]
      %v360 = vld [vmem:[%s3 + $0x48] sm:$0xff]
      %v361 = vld [vmem:[%s3 + $0x50] sm:$0xff]
      %v362 = vld [vmem:[%s3 + $0x58] sm:$0xff]
      %v363 = vld [vmem:[%s3 + $0x60] sm:$0xff]
      %v364 = vld [vmem:[%s3 + $0x68] sm:$0xff]
      %v365 = vld [vmem:[%s3 + $0x70] sm:$0xff]
      %v366 = vld [vmem:[%s3 + $0x78] sm:$0xff]
      %368 = vset.pattern.permute.xlu0 0
      %369 = vperm.xlu0 %368, %v351
      %v370 = vpop.permute.xlu0 %369
      %373 = vset.pattern.permute.xlu0 0
      %374 = vperm.xlu0 %373, %v352
      %v375 = vpop.permute.xlu0 %374
      %378 = vset.pattern.permute.xlu0 0
      %379 = vperm.xlu0 %378, %v353
      %v380 = vpop.permute.xlu0 %379
      %383 = vset.pattern.permute.xlu0 0
      %384 = vperm.xlu0 %383, %v354
      %v385 = vpop.permute.xlu0 %384
      %388 = vset.pattern.permute.xlu0 0
      %389 = vperm.xlu0 %388, %v355
      %v390 = vpop.permute.xlu0 %389
      %393 = vset.pattern.permute.xlu0 0
      %394 = vperm.xlu0 %393, %v356
      %v395 = vpop.permute.xlu0 %394
      %398 = vset.pattern.permute.xlu0 0
      %399 = vperm.xlu0 %398, %v357
      %v400 = vpop.permute.xlu0 %399
      %403 = vset.pattern.permute.xlu0 0
      %404 = vperm.xlu0 %403, %v358
      %v405 = vpop.permute.xlu0 %404
      %408 = vset.pattern.permute.xlu0 0
      %409 = vperm.xlu0 %408, %v359
      %v410 = vpop.permute.xlu0 %409
      %413 = vset.pattern.permute.xlu0 0
      %414 = vperm.xlu0 %413, %v360
      %v415 = vpop.permute.xlu0 %414
      %418 = vset.pattern.permute.xlu0 0
      %419 = vperm.xlu0 %418, %v361
      %v420 = vpop.permute.xlu0 %419
      %423 = vset.pattern.permute.xlu0 0
      %424 = vperm.xlu0 %423, %v362
      %v425 = vpop.permute.xlu0 %424
      %428 = vset.pattern.permute.xlu0 0
      %429 = vperm.xlu0 %428, %v363
      %v430 = vpop.permute.xlu0 %429
      %433 = vset.pattern.permute.xlu0 0
      %434 = vperm.xlu0 %433, %v364
      %v435 = vpop.permute.xlu0 %434
      %438 = vset.pattern.permute.xlu0 0
      %439 = vperm.xlu0 %438, %v365
      %v440 = vpop.permute.xlu0 %439
      %443 = vset.pattern.permute.xlu0 0
      %444 = vperm.xlu0 %443, %v366
      %v445 = vpop.permute.xlu0 %444
      %v447 = vmul.f32 %v335, %v370
      %v448 = vmul.f32 %v336, %v375
      %v449 = vmul.f32 %v337, %v380
      %v450 = vmul.f32 %v338, %v385
      %v451 = vmul.f32 %v339, %v390
      %v452 = vmul.f32 %v340, %v395
      %v453 = vmul.f32 %v341, %v400
      %v454 = vmul.f32 %v342, %v405
      %v455 = vmul.f32 %v343, %v410
      %v456 = vmul.f32 %v344, %v415
      %v457 = vmul.f32 %v345, %v420
      %v458 = vmul.f32 %v346, %v425
      %v459 = vmul.f32 %v347, %v430
      %v460 = vmul.f32 %v348, %v435
      %v461 = vmul.f32 %v349, %v440
      %v462 = vmul.f32 %v350, %v445
      %v463 = vld [vmem:[%s4] sm:$0xff]
      %v464 = vld [vmem:[%s4 + $0x8] sm:$0xff]
      %v465 = vld [vmem:[%s4 + $0x10] sm:$0xff]
      %v466 = vld [vmem:[%s4 + $0x18] sm:$0xff]
      %v467 = vld [vmem:[%s4 + $0x20] sm:$0xff]
      %v468 = vld [vmem:[%s4 + $0x28] sm:$0xff]
      %v469 = vld [vmem:[%s4 + $0x30] sm:$0xff]
      %v470 = vld [vmem:[%s4 + $0x38] sm:$0xff]
      %v471 = vld [vmem:[%s4 + $0x40] sm:$0xff]
      %v472 = vld [vmem:[%s4 + $0x48] sm:$0xff]
      %v473 = vld [vmem:[%s4 + $0x50] sm:$0xff]
      %v474 = vld [vmem:[%s4 + $0x58] sm:$0xff]
      %v475 = vld [vmem:[%s4 + $0x60] sm:$0xff]
      %v476 = vld [vmem:[%s4 + $0x68] sm:$0xff]
      %v477 = vld [vmem:[%s4 + $0x70] sm:$0xff]
      %v478 = vld [vmem:[%s4 + $0x78] sm:$0xff]
      %v479 = vld [vmem:[#allocation8] sm:$0xf]
      %v480 = vld [vmem:[#allocation8 + $0x4] sm:$0xf]
      %v481 = vld [vmem:[#allocation8 + $0x8] sm:$0xf]
      %v482 = vld [vmem:[#allocation8 + $0xc] sm:$0xf]
      %v483 = vld [vmem:[#allocation8 + $0x10] sm:$0xf]
      %v484 = vld [vmem:[#allocation8 + $0x14] sm:$0xf]
      %v485 = vld [vmem:[#allocation8 + $0x18] sm:$0xf]
      %v486 = vld [vmem:[#allocation8 + $0x1c] sm:$0xf]
      %v487 = vld [vmem:[#allocation8 + $0x20] sm:$0xf]
      %v488 = vld [vmem:[#allocation8 + $0x24] sm:$0xf]
      %v489 = vld [vmem:[#allocation8 + $0x28] sm:$0xf]
      %v490 = vld [vmem:[#allocation8 + $0x2c] sm:$0xf]
      %v491 = vld [vmem:[#allocation8 + $0x30] sm:$0xf]
      %v492 = vld [vmem:[#allocation8 + $0x34] sm:$0xf]
      %v493 = vld [vmem:[#allocation8 + $0x38] sm:$0xf]
      %v494 = vld [vmem:[#allocation8 + $0x3c] sm:$0xf]
      %v495 = vunpack.c.l.bf16 %v479
      %v496 = vunpack.c.l.bf16 %v480
      %v497 = vunpack.c.l.bf16 %v481
      %v498 = vunpack.c.l.bf16 %v482
      %v499 = vunpack.c.l.bf16 %v483
      %v500 = vunpack.c.l.bf16 %v484
      %v501 = vunpack.c.l.bf16 %v485
      %v502 = vunpack.c.l.bf16 %v486
      %v503 = vunpack.c.l.bf16 %v487
      %v504 = vunpack.c.l.bf16 %v488
      %v505 = vunpack.c.l.bf16 %v489
      %v506 = vunpack.c.l.bf16 %v490
      %v507 = vunpack.c.l.bf16 %v491
      %v508 = vunpack.c.l.bf16 %v492
      %v509 = vunpack.c.l.bf16 %v493
      %v510 = vunpack.c.l.bf16 %v494
      %v511 = vld [vmem:[#allocation9] sm:$0xff]
      %v512 = vld [vmem:[#allocation9 + $0x8] sm:$0xff]
      %v513 = vld [vmem:[#allocation9 + $0x10] sm:$0xff]
      %v514 = vld [vmem:[#allocation9 + $0x18] sm:$0xff]
      %v515 = vld [vmem:[#allocation9 + $0x20] sm:$0xff]
      %v516 = vld [vmem:[#allocation9 + $0x28] sm:$0xff]
      %v517 = vld [vmem:[#allocation9 + $0x30] sm:$0xff]
      %v518 = vld [vmem:[#allocation9 + $0x38] sm:$0xff]
      %v519 = vld [vmem:[#allocation9 + $0x40] sm:$0xff]
      %v520 = vld [vmem:[#allocation9 + $0x48] sm:$0xff]
      %v521 = vld [vmem:[#allocation9 + $0x50] sm:$0xff]
      %v522 = vld [vmem:[#allocation9 + $0x58] sm:$0xff]
      %v523 = vld [vmem:[#allocation9 + $0x60] sm:$0xff]
      %v524 = vld [vmem:[#allocation9 + $0x68] sm:$0xff]
      %v525 = vld [vmem:[#allocation9 + $0x70] sm:$0xff]
      %v526 = vld [vmem:[#allocation9 + $0x78] sm:$0xff]
      %527 = vmatpush.msra.mxu0 %v526
      %528 = vmatpush.msra.mxu0 %v525
      %529 = vmatpush.msra.mxu0 %v524
      %530 = vmatpush.msra.mxu0 %v523
      %531 = vmatpush.msra.mxu0 %v522
      %532 = vmatpush.msra.mxu0 %v521
      %533 = vmatpush.msra.mxu0 %v520
      %534 = vmatpush.msra.mxu0 %v519
      %535 = vmatpush.msra.mxu0 %v518
      %536 = vmatpush.msra.mxu0 %v517
      %537 = vmatpush.msra.mxu0 %v516
      %538 = vmatpush.msra.mxu0 %v515
      %539 = vmatpush.msra.mxu0 %v514
      %540 = vmatpush.msra.mxu0 %v513
      %541 = vmatpush.msra.mxu0 %v512
      %542 = vmatpush.msra.mxu0 %v511
      %543 = vmatmul.f32.gmra.mxu0 %v495
      %v544 = vpop.f32.mrf.mxu0
      %v545 = vadd.f32 0.0, %v544
      %546 = vmatmul.f32.gmra.mxu0 %v496
      %v547 = vpop.f32.mrf.mxu0
      %v548 = vadd.f32 0.0, %v547
      %549 = vmatmul.f32.gmra.mxu0 %v497
      %v550 = vpop.f32.mrf.mxu0
      %v551 = vadd.f32 0.0, %v550
      %552 = vmatmul.f32.gmra.mxu0 %v498
      %v553 = vpop.f32.mrf.mxu0
      %v554 = vadd.f32 0.0, %v553
      %555 = vmatmul.f32.gmra.mxu0 %v499
      %v556 = vpop.f32.mrf.mxu0
      %v557 = vadd.f32 0.0, %v556
      %558 = vmatmul.f32.gmra.mxu0 %v500
      %v559 = vpop.f32.mrf.mxu0
      %v560 = vadd.f32 0.0, %v559
      %561 = vmatmul.f32.gmra.mxu0 %v501
      %v562 = vpop.f32.mrf.mxu0
      %v563 = vadd.f32 0.0, %v562
      %564 = vmatmul.f32.gmra.mxu0 %v502
      %v565 = vpop.f32.mrf.mxu0
      %v566 = vadd.f32 0.0, %v565
      %567 = vmatmul.f32.gmra.mxu0 %v503
      %v568 = vpop.f32.mrf.mxu0
      %v569 = vadd.f32 0.0, %v568
      %570 = vmatmul.f32.gmra.mxu0 %v504
      %v571 = vpop.f32.mrf.mxu0
      %v572 = vadd.f32 0.0, %v571
      %573 = vmatmul.f32.gmra.mxu0 %v505
      %v574 = vpop.f32.mrf.mxu0
      %v575 = vadd.f32 0.0, %v574
      %576 = vmatmul.f32.gmra.mxu0 %v506
      %v577 = vpop.f32.mrf.mxu0
      %v578 = vadd.f32 0.0, %v577
      %579 = vmatmul.f32.gmra.mxu0 %v507
      %v580 = vpop.f32.mrf.mxu0
      %v581 = vadd.f32 0.0, %v580
      %582 = vmatmul.f32.gmra.mxu0 %v508
      %v583 = vpop.f32.mrf.mxu0
      %v584 = vadd.f32 0.0, %v583
      %585 = vmatmul.f32.gmra.mxu0 %v509
      %v586 = vpop.f32.mrf.mxu0
      %v587 = vadd.f32 0.0, %v586
      %588 = vmatmul.f32.gmra.mxu0 %v510
      %v589 = vpop.f32.mrf.mxu0
      %v590 = vadd.f32 0.0, %v589
      %591 = vdwg.mxu0
      %592 = vmatpush.msra.mxu0 %v478
      %593 = vmatpush.msra.mxu0 %v477
      %594 = vmatpush.msra.mxu0 %v476
      %595 = vmatpush.msra.mxu0 %v475
      %596 = vmatpush.msra.mxu0 %v474
      %597 = vmatpush.msra.mxu0 %v473
      %598 = vmatpush.msra.mxu0 %v472
      %599 = vmatpush.msra.mxu0 %v471
      %600 = vmatpush.msra.mxu0 %v470
      %601 = vmatpush.msra.mxu0 %v469
      %602 = vmatpush.msra.mxu0 %v468
      %603 = vmatpush.msra.mxu0 %v467
      %604 = vmatpush.msra.mxu0 %v466
      %605 = vmatpush.msra.mxu0 %v465
      %606 = vmatpush.msra.mxu0 %v464
      %607 = vmatpush.msra.mxu0 %v463
      %608 = vmatmul.f32.gmra.mxu0 %v447
      %v609 = vpop.f32.mrf.mxu0
      %v610 = vadd.f32 %v545, %v609
      %611 = vmatmul.f32.gmra.mxu0 %v448
      %v612 = vpop.f32.mrf.mxu0
      %v613 = vadd.f32 %v548, %v612
      %614 = vmatmul.f32.gmra.mxu0 %v449
      %v615 = vpop.f32.mrf.mxu0
      %v616 = vadd.f32 %v551, %v615
      %617 = vmatmul.f32.gmra.mxu0 %v450
      %v618 = vpop.f32.mrf.mxu0
      %v619 = vadd.f32 %v554, %v618
      %620 = vmatmul.f32.gmra.mxu0 %v451
      %v621 = vpop.f32.mrf.mxu0
      %v622 = vadd.f32 %v557, %v621
      %623 = vmatmul.f32.gmra.mxu0 %v452
      %v624 = vpop.f32.mrf.mxu0
      %v625 = vadd.f32 %v560, %v624
      %626 = vmatmul.f32.gmra.mxu0 %v453
      %v627 = vpop.f32.mrf.mxu0
      %v628 = vadd.f32 %v563, %v627
      %629 = vmatmul.f32.gmra.mxu0 %v454
      %v630 = vpop.f32.mrf.mxu0
      %v631 = vadd.f32 %v566, %v630
      %632 = vmatmul.f32.gmra.mxu0 %v455
      %v633 = vpop.f32.mrf.mxu0
      %v634 = vadd.f32 %v569, %v633
      %635 = vmatmul.f32.gmra.mxu0 %v456
      %v636 = vpop.f32.mrf.mxu0
      %v637 = vadd.f32 %v572, %v636
      %638 = vmatmul.f32.gmra.mxu0 %v457
      %v639 = vpop.f32.mrf.mxu0
      %v640 = vadd.f32 %v575, %v639
      %641 = vmatmul.f32.gmra.mxu0 %v458
      %v642 = vpop.f32.mrf.mxu0
      %v643 = vadd.f32 %v578, %v642
      %644 = vmatmul.f32.gmra.mxu0 %v459
      %v645 = vpop.f32.mrf.mxu0
      %v646 = vadd.f32 %v581, %v645
      %647 = vmatmul.f32.gmra.mxu0 %v460
      %v648 = vpop.f32.mrf.mxu0
      %v649 = vadd.f32 %v584, %v648
      %650 = vmatmul.f32.gmra.mxu0 %v461
      %v651 = vpop.f32.mrf.mxu0
      %v652 = vadd.f32 %v587, %v651
      %653 = vmatmul.f32.gmra.mxu0 %v462
      %v654 = vpop.f32.mrf.mxu0
      %v655 = vadd.f32 %v590, %v654
      %656 = vdwg.mxu0
      %v657 = vmax.f32 %v610, 0.0
      %v658 = vmax.f32 %v613, 0.0
      %v659 = vmax.f32 %v616, 0.0
      %v660 = vmax.f32 %v619, 0.0
      %v661 = vmax.f32 %v622, 0.0
      %v662 = vmax.f32 %v625, 0.0
      %v663 = vmax.f32 %v628, 0.0
      %v664 = vmax.f32 %v631, 0.0
      %v665 = vmax.f32 %v634, 0.0
      %v666 = vmax.f32 %v637, 0.0
      %v667 = vmax.f32 %v640, 0.0
      %v668 = vmax.f32 %v643, 0.0
      %v669 = vmax.f32 %v646, 0.0
      %v670 = vmax.f32 %v649, 0.0
      %v671 = vmax.f32 %v652, 0.0
      %v672 = vmax.f32 %v655, 0.0
      %v673 = vmul.f32 %v657, %v657
      %v674 = vmul.f32 %v658, %v658
      %v675 = vmul.f32 %v659, %v659
      %v676 = vmul.f32 %v660, %v660
      %v677 = vmul.f32 %v661, %v661
      %v678 = vmul.f32 %v662, %v662
      %v679 = vmul.f32 %v663, %v663
      %v680 = vmul.f32 %v664, %v664
      %v681 = vmul.f32 %v665, %v665
      %v682 = vmul.f32 %v666, %v666
      %v683 = vmul.f32 %v667, %v667
      %v684 = vmul.f32 %v668, %v668
      %v685 = vmul.f32 %v669, %v669
      %v686 = vmul.f32 %v670, %v670
      %v687 = vmul.f32 %v671, %v671
      %v688 = vmul.f32 %v672, %v672
      %689 = vadd.xlane.f32.xlu0 %v673
      %v690 = vpop.xlane.xlu0 %689
      %691 = vadd.xlane.f32.xlu0 %v674
      %v692 = vpop.xlane.xlu0 %691
      %693 = vadd.xlane.f32.xlu0 %v675
      %v694 = vpop.xlane.xlu0 %693
      %695 = vadd.xlane.f32.xlu0 %v676
      %v696 = vpop.xlane.xlu0 %695
      %697 = vadd.xlane.f32.xlu0 %v677
      %v698 = vpop.xlane.xlu0 %697
      %699 = vadd.xlane.f32.xlu0 %v678
      %v700 = vpop.xlane.xlu0 %699
      %701 = vadd.xlane.f32.xlu0 %v679
      %v702 = vpop.xlane.xlu0 %701
      %703 = vadd.xlane.f32.xlu0 %v680
      %v704 = vpop.xlane.xlu0 %703
      %705 = vadd.xlane.f32.xlu0 %v681
      %v706 = vpop.xlane.xlu0 %705
      %707 = vadd.xlane.f32.xlu0 %v682
      %v708 = vpop.xlane.xlu0 %707
      %709 = vadd.xlane.f32.xlu0 %v683
      %v710 = vpop.xlane.xlu0 %709
      %711 = vadd.xlane.f32.xlu0 %v684
      %v712 = vpop.xlane.xlu0 %711
      %713 = vadd.xlane.f32.xlu0 %v685
      %v714 = vpop.xlane.xlu0 %713
      %715 = vadd.xlane.f32.xlu0 %v686
      %v716 = vpop.xlane.xlu0 %715
      %717 = vadd.xlane.f32.xlu0 %v687
      %v718 = vpop.xlane.xlu0 %717
      %719 = vadd.xlane.f32.xlu0 %v688
      %v720 = vpop.xlane.xlu0 %719
      %v721 = vmax.f32 %v690, 1e-24
      %v722 = vmax.f32 %v692, 1e-24
      %v723 = vmax.f32 %v694, 1e-24
      %v724 = vmax.f32 %v696, 1e-24
      %v725 = vmax.f32 %v698, 1e-24
      %v726 = vmax.f32 %v700, 1e-24
      %v727 = vmax.f32 %v702, 1e-24
      %v728 = vmax.f32 %v704, 1e-24
      %v729 = vmax.f32 %v706, 1e-24
      %v730 = vmax.f32 %v708, 1e-24
      %v731 = vmax.f32 %v710, 1e-24
      %v732 = vmax.f32 %v712, 1e-24
      %v733 = vmax.f32 %v714, 1e-24
      %v734 = vmax.f32 %v716, 1e-24
      %v735 = vmax.f32 %v718, 1e-24
      %v736 = vmax.f32 %v720, 1e-24
      %v737 = vrsqrt.pop %v721
      %v738 = vmul.f32 %v737, %v721
      %v739 = vmul.f32 %v738, %v737
      %v740 = vmul.f32 0.5, %v739
      %v741 = vsub.f32 1.5, %v740
      %v742 = vmul.f32 %v737, %v741
      %vm743 = vweird.f32 %v721
      %vm744 = vweird.f32 %v737
      %vm745 = vmor %vm743, %vm744
      %v746 = vsel %vm745, %v737, %v742
      %v747 = vrsqrt.pop %v722
      %v748 = vmul.f32 %v747, %v722
      %v749 = vmul.f32 %v748, %v747
      %v750 = vmul.f32 0.5, %v749
      %v751 = vsub.f32 1.5, %v750
      %v752 = vmul.f32 %v747, %v751
      %vm753 = vweird.f32 %v722
      %vm754 = vweird.f32 %v747
      %vm755 = vmor %vm753, %vm754
      %v756 = vsel %vm755, %v747, %v752
      %v757 = vrsqrt.pop %v723
      %v758 = vmul.f32 %v757, %v723
      %v759 = vmul.f32 %v758, %v757
      %v760 = vmul.f32 0.5, %v759
      %v761 = vsub.f32 1.5, %v760
      %v762 = vmul.f32 %v757, %v761
      %vm763 = vweird.f32 %v723
      %vm764 = vweird.f32 %v757
      %vm765 = vmor %vm763, %vm764
      %v766 = vsel %vm765, %v757, %v762
      %v767 = vrsqrt.pop %v724
      %v768 = vmul.f32 %v767, %v724
      %v769 = vmul.f32 %v768, %v767
      %v770 = vmul.f32 0.5, %v769
      %v771 = vsub.f32 1.5, %v770
      %v772 = vmul.f32 %v767, %v771
      %vm773 = vweird.f32 %v724
      %vm774 = vweird.f32 %v767
      %vm775 = vmor %vm773, %vm774
      %v776 = vsel %vm775, %v767, %v772
      %v777 = vrsqrt.pop %v725
      %v778 = vmul.f32 %v777, %v725
      %v779 = vmul.f32 %v778, %v777
      %v780 = vmul.f32 0.5, %v779
      %v781 = vsub.f32 1.5, %v780
      %v782 = vmul.f32 %v777, %v781
      %vm783 = vweird.f32 %v725
      %vm784 = vweird.f32 %v777
      %vm785 = vmor %vm783, %vm784
      %v786 = vsel %vm785, %v777, %v782
      %v787 = vrsqrt.pop %v726
      %v788 = vmul.f32 %v787, %v726
      %v789 = vmul.f32 %v788, %v787
      %v790 = vmul.f32 0.5, %v789
      %v791 = vsub.f32 1.5, %v790
      %v792 = vmul.f32 %v787, %v791
      %vm793 = vweird.f32 %v726
      %vm794 = vweird.f32 %v787
      %vm795 = vmor %vm793, %vm794
      %v796 = vsel %vm795, %v787, %v792
      %v797 = vrsqrt.pop %v727
      %v798 = vmul.f32 %v797, %v727
      %v799 = vmul.f32 %v798, %v797
      %v800 = vmul.f32 0.5, %v799
      %v801 = vsub.f32 1.5, %v800
      %v802 = vmul.f32 %v797, %v801
      %vm803 = vweird.f32 %v727
      %vm804 = vweird.f32 %v797
      %vm805 = vmor %vm803, %vm804
      %v806 = vsel %vm805, %v797, %v802
      %v807 = vrsqrt.pop %v728
      %v808 = vmul.f32 %v807, %v728
      %v809 = vmul.f32 %v808, %v807
      %v810 = vmul.f32 0.5, %v809
      %v811 = vsub.f32 1.5, %v810
      %v812 = vmul.f32 %v807, %v811
      %vm813 = vweird.f32 %v728
      %vm814 = vweird.f32 %v807
      %vm815 = vmor %vm813, %vm814
      %v816 = vsel %vm815, %v807, %v812
      %v817 = vrsqrt.pop %v729
      %v818 = vmul.f32 %v817, %v729
      %v819 = vmul.f32 %v818, %v817
      %v820 = vmul.f32 0.5, %v819
      %v821 = vsub.f32 1.5, %v820
      %v822 = vmul.f32 %v817, %v821
      %vm823 = vweird.f32 %v729
      %vm824 = vweird.f32 %v817
      %vm825 = vmor %vm823, %vm824
      %v826 = vsel %vm825, %v817, %v822
      %v827 = vrsqrt.pop %v730
      %v828 = vmul.f32 %v827, %v730
      %v829 = vmul.f32 %v828, %v827
      %v830 = vmul.f32 0.5, %v829
      %v831 = vsub.f32 1.5, %v830
      %v832 = vmul.f32 %v827, %v831
      %vm833 = vweird.f32 %v730
      %vm834 = vweird.f32 %v827
      %vm835 = vmor %vm833, %vm834
      %v836 = vsel %vm835, %v827, %v832
      %v837 = vrsqrt.pop %v731
      %v838 = vmul.f32 %v837, %v731
      %v839 = vmul.f32 %v838, %v837
      %v840 = vmul.f32 0.5, %v839
      %v841 = vsub.f32 1.5, %v840
      %v842 = vmul.f32 %v837, %v841
      %vm843 = vweird.f32 %v731
      %vm844 = vweird.f32 %v837
      %vm845 = vmor %vm843, %vm844
      %v846 = vsel %vm845, %v837, %v842
      %v847 = vrsqrt.pop %v732
      %v848 = vmul.f32 %v847, %v732
      %v849 = vmul.f32 %v848, %v847
      %v850 = vmul.f32 0.5, %v849
      %v851 = vsub.f32 1.5, %v850
      %v852 = vmul.f32 %v847, %v851
      %vm853 = vweird.f32 %v732
      %vm854 = vweird.f32 %v847
      %vm855 = vmor %vm853, %vm854
      %v856 = vsel %vm855, %v847, %v852
      %v857 = vrsqrt.pop %v733
      %v858 = vmul.f32 %v857, %v733
      %v859 = vmul.f32 %v858, %v857
      %v860 = vmul.f32 0.5, %v859
      %v861 = vsub.f32 1.5, %v860
      %v862 = vmul.f32 %v857, %v861
      %vm863 = vweird.f32 %v733
      %vm864 = vweird.f32 %v857
      %vm865 = vmor %vm863, %vm864
      %v866 = vsel %vm865, %v857, %v862
      %v867 = vrsqrt.pop %v734
      %v868 = vmul.f32 %v867, %v734
      %v869 = vmul.f32 %v868, %v867
      %v870 = vmul.f32 0.5, %v869
      %v871 = vsub.f32 1.5, %v870
      %v872 = vmul.f32 %v867, %v871
      %vm873 = vweird.f32 %v734
      %vm874 = vweird.f32 %v867
      %vm875 = vmor %vm873, %vm874
      %v876 = vsel %vm875, %v867, %v872
      %v877 = vrsqrt.pop %v735
      %v878 = vmul.f32 %v877, %v735
      %v879 = vmul.f32 %v878, %v877
      %v880 = vmul.f32 0.5, %v879
      %v881 = vsub.f32 1.5, %v880
      %v882 = vmul.f32 %v877, %v881
      %vm883 = vweird.f32 %v735
      %vm884 = vweird.f32 %v877
      %vm885 = vmor %vm883, %vm884
      %v886 = vsel %vm885, %v877, %v882
      %v887 = vrsqrt.pop %v736
      %v888 = vmul.f32 %v887, %v736
      %v889 = vmul.f32 %v888, %v887
      %v890 = vmul.f32 0.5, %v889
      %v891 = vsub.f32 1.5, %v890
      %v892 = vmul.f32 %v887, %v891
      %vm893 = vweird.f32 %v736
      %vm894 = vweird.f32 %v887
      %vm895 = vmor %vm893, %vm894
      %v896 = vsel %vm895, %v887, %v892
      %v897 = vmul.f32 %v657, %v746
      %v898 = vmul.f32 %v658, %v756
      %v899 = vmul.f32 %v659, %v766
      %v900 = vmul.f32 %v660, %v776
      %v901 = vmul.f32 %v661, %v786
      %v902 = vmul.f32 %v662, %v796
      %v903 = vmul.f32 %v663, %v806
      %v904 = vmul.f32 %v664, %v816
      %v905 = vmul.f32 %v665, %v826
      %v906 = vmul.f32 %v666, %v836
      %v907 = vmul.f32 %v667, %v846
      %v908 = vmul.f32 %v668, %v856
      %v909 = vmul.f32 %v669, %v866
      %v910 = vmul.f32 %v670, %v876
      %v911 = vmul.f32 %v671, %v886
      %v912 = vmul.f32 %v672, %v896
      %913 = vst [vmem:[#allocation11] sm:$0xff] %v897
      %914 = vst [vmem:[#allocation11 + $0x8] sm:$0xff] %v898
      %915 = vst [vmem:[#allocation11 + $0x10] sm:$0xff] %v899
      %916 = vst [vmem:[#allocation11 + $0x18] sm:$0xff] %v900
      %917 = vst [vmem:[#allocation11 + $0x20] sm:$0xff] %v901
      %918 = vst [vmem:[#allocation11 + $0x28] sm:$0xff] %v902
      %919 = vst [vmem:[#allocation11 + $0x30] sm:$0xff] %v903
      %920 = vst [vmem:[#allocation11 + $0x38] sm:$0xff] %v904
      %921 = vst [vmem:[#allocation11 + $0x40] sm:$0xff] %v905
      %922 = vst [vmem:[#allocation11 + $0x48] sm:$0xff] %v906
      %923 = vst [vmem:[#allocation11 + $0x50] sm:$0xff] %v907
      %924 = vst [vmem:[#allocation11 + $0x58] sm:$0xff] %v908
      %925 = vst [vmem:[#allocation11 + $0x60] sm:$0xff] %v909
      %926 = vst [vmem:[#allocation11 + $0x68] sm:$0xff] %v910
      %927 = vst [vmem:[#allocation11 + $0x70] sm:$0xff] %v911
      %928 = vst [vmem:[#allocation11 + $0x78] sm:$0xff] %v912
    $region49: #{tpu_custom_call.1} parent=1 // pred_fallthru
      _
    // Predicated region
    $region50: #{tpu_custom_call.1} parent=1 // pred_check
      _
    $region51: #{tpu_custom_call.1} parent=1 // pred_check_branch
      %930 = sbr.rel (0) target = $region53
    $region52: #{tpu_custom_call.1} parent=1 // pred_region
      %932 = vsyncadd [#allocation5], 0
      %s933 = sshll.u32 [#allocation11], 4
      %s934 = int_to_ptr.vmem [resolvable:$true] %s933
      %s935 = sshll.u32 %s6, 4
      %s936 = int_to_ptr.hbm [resolvable:$true] %s935
      %941 = dma.vmem_to_hbm [thread:$0]  %s934, 2048, %s936, [#allocation5], 128, 128, 8
    $region53: #{tpu_custom_call.1} parent=1 // pred_fallthru
      _
    // Predicated region
    $region54: #{tpu_custom_call.1} parent=1 // pred_check
      _
    $region55: #{tpu_custom_call.1} parent=1 // pred_check_branch
      %943 = sbr.rel (0) target = $region57
    $region56: #{tpu_custom_call.1} parent=1 // pred_region
      %945 = dma.done [#allocation5], 2048
    $region57: #{tpu_custom_call.1} parent=1 // pred_fallthru
      _
    %946 = vsyncpa [#allocation4], 1
    %947 = vsyncpa [#allocation7], 1
    %948 = vsyncpa [#allocation10], 1
    %949 = vsyncpa [#allocation5], 1

</llo_original>
